<compile_context>
chip_gen: v7x
topology: tpu7x:2x2x1
jax: 0.10.0
libtpu: 0.0.40
codegen_flags: <defaults>
</compile_context>

<pallas_src>
import functools

import jax
import jax.numpy as jnp
from jax.experimental import pallas as pl
from jax.experimental.pallas import tpu as pltpu

SUB = 128  # in-kernel row sub-chunk: one lane-width of output, activations fit in vregs


def _cdiv(a, b):
    return -(-a // b)


def _mlp_kernel(x_ref, w1_ref, w2_ref, small_ref, o_ref):
    # x_ref:     (block_b, D_in)  float32   (bf16 cast done here, on the VPU)
    # w1_ref:    (D_in, 128)      bfloat16
    # w2_ref:    (128, 128)       bfloat16  (fc2's 84 output cols zero-padded to 128)
    # small_ref: (4, 128)         float32   rows: b1, b2 (padded), w3 (padded), b3 (bcast)
    # o_ref:     (1, block_b)     float32   lane-dense output row
    b1 = small_ref[0:1, :]
    b2 = small_ref[1:2, :]
    w3 = small_ref[2:3, :]
    b3 = small_ref[3:4, :]

    block_rows = x_ref.shape[0]
    # Static unroll over 128-row sub-chunks: per-chunk live set (~40 vregs) fits
    # the 64-vreg file on every generation, so no spill traffic on the single
    # v5e store slot; the outer DMA block stays large.
    for c in range(block_rows // SUB):
        lo = c * SUB
        hi = lo + SUB

        # fc1 + ReLU: bf16 MXU inputs, f32 accumulation, f32 elementwise.
        xs = x_ref[lo:hi, :].astype(jnp.bfloat16)
        h1 = jnp.dot(xs, w1_ref[...], preferred_element_type=jnp.float32)
        h1 = jnp.maximum(h1 + b1, 0.0)

        # fc2 + ReLU (84 padded to 128; pad cols of W2/b2 are zero).
        h2 = jnp.dot(h1.astype(jnp.bfloat16), w2_ref[...],
                     preferred_element_type=jnp.float32)
        h2 = jnp.maximum(h2 + b2, 0.0)

        # fc3 (out_features == 1): contract w3's hidden dim with h2's hidden dim
        # -> (1, SUB). The result lands lane-dense, so the store below is an
        # unmasked, 128-lane-aligned write instead of a (SUB, 1) masked column.
        # f32 on the MXU; tiny. Padded w3 entries are zero -> no contribution.
        out_row = jax.lax.dot_general(
            w3, h2, (((1,), (1,)), ((), ())),
            preferred_element_type=jnp.float32)
        o_ref[:, lo:hi] = (out_row + b3).astype(o_ref.dtype)


@functools.partial(jax.jit, static_argnames=("block_b", "n_rows"))
def _ff_v_forward_impl(x, w1_bf, w2_bf, small, *, block_b, n_rows):
    B, D_in = x.shape
    H1 = w1_bf.shape[1]
    H2p = w2_bf.shape[1]
    assert H1 == 128 and H2p == 128 and small.shape == (4, 128)
    assert block_b % SUB == 0
    num_blocks = _cdiv(B, block_b)

    out = pl.pallas_call(
        _mlp_kernel,
        out_shape=jax.ShapeDtypeStruct((1, num_blocks * block_b), jnp.float32),
        grid_spec=pltpu.PrefetchScalarGridSpec(
            num_scalar_prefetch=0,
            grid=(num_blocks,),
            in_specs=[
                # x tile: f32, ragged last block handled by Pallas block clamping
                # (no cross-row reductions -> garbage pad rows only produce
                # output lanes that get sliced off).
                pl.BlockSpec((block_b, D_in), lambda i: (i, 0)),
                pl.BlockSpec((D_in, H1), lambda i: (0, 0)),   # W1  bf16 (resident)
                pl.BlockSpec((H1, H2p), lambda i: (0, 0)),    # W2p bf16 (resident)
                pl.BlockSpec((4, H2p), lambda i: (0, 0)),     # packed b1/b2/w3/b3, f32
            ],
            out_specs=pl.BlockSpec((1, block_b), lambda i: (0, i)),  # lane-dense
        ),
        compiler_params=pltpu.CompilerParams(
            dimension_semantics=("parallel",),
            vmem_limit_bytes=32 * 1024 * 1024,  # plenty; safe on v7x's 64 MiB VMEM
        ),
    )(x, w1_bf, w2_bf, small)

    # Output row g*block_b + j lives at out[0, g*block_b + j]; reshape is cheap.
    return out[0, :n_rows].reshape(n_rows, 1)


def prepare_params(w1, b1, w2, b2, w3, b3):
    """One-time preprocessing (hoisted out of the per-call path).

    Weights are stored as (in_features, out_features) so the kernel computes
    x @ W + b, matching nn.Linear. Returns (w1_bf16, w2_padded_bf16, small)
    where `small` packs b1, padded b2, padded w3-row and broadcast b3 into a
    single (4, 128) f32 block.
    """
    D_in, H1 = w1.shape
    H2 = w2.shape[1]
    assert H1 == 128 and H2 <= 128 and w3.shape == (H2, 1)
    pad2 = 128 - H2

    w1_bf = jnp.asarray(w1, jnp.float32).astype(jnp.bfloat16)                    # (D_in, 128)
    w2_bf = jnp.pad(jnp.asarray(w2, jnp.float32), ((0, 0), (0, pad2))).astype(jnp.bfloat16)  # (128,128)

    b1r = jnp.asarray(b1, jnp.float32).reshape(1, H1)
    b2r = jnp.pad(jnp.asarray(b2, jnp.float32).reshape(1, H2), ((0, 0), (0, pad2)))
    w3r = jnp.pad(jnp.asarray(w3, jnp.float32).reshape(1, H2), ((0, 0), (0, pad2)))
    b3r = jnp.broadcast_to(jnp.asarray(b3, jnp.float32).reshape(1, 1), (1, 128))
    small = jnp.concatenate([b1r, b2r, w3r, b3r], axis=0)                        # (4, 128) f32
    return w1_bf, w2_bf, small


def ff_v_estimator_forward(x, prepared, *, max_block_b=4096):
    """x: (B, D_in) float32 -> (B, 1) float32 (bf16 matmuls, f32 accumulation)."""
    B = x.shape[0]
    max_block_b = max(SUB, (max_block_b // SUB) * SUB)
    if B < SUB:
        # Tiny batch: one-off pad to a single 128-row tile (negligible traffic).
        x_in = jnp.pad(x, ((0, SUB - B), (0, 0)))
        block_b = SUB
    else:
        # Large batch: no padding pass over x. Balance rows per grid step and
        # keep the block row count <= B so only the last block is ragged.
        x_in = x
        n_steps = _cdiv(B, max_block_b)
        per_step = _cdiv(B, n_steps)
        block_b = min(_cdiv(per_step, SUB) * SUB, (B // SUB) * SUB)
    return _ff_v_forward_impl(x_in, *prepared, block_b=block_b, n_rows=B)


def init_params(key, d_in, h1=128, h2=84, h3=1):
    """Mirror torch.nn.Linear default init (U[-1/sqrt(fan_in), 1/sqrt(fan_in)]).
    Weights stored as (in_features, out_features)."""
    ks = jax.random.split(key, 6)

    def lin(kw, kb, fan_in, fan_out):
        bound = 1.0 / jnp.sqrt(fan_in)
        w = jax.random.uniform(kw, (fan_in, fan_out), jnp.float32, -bound, bound)
        b = jax.random.uniform(kb, (1, fan_out), jnp.float32, -bound, bound)
        return w, b

    w1, b1 = lin(ks[0], ks[1], d_in, h1)
    w2, b2 = lin(ks[2], ks[3], h1, h2)
    w3, b3 = lin(ks[4], ks[5], h2, h3)
    return w1, b1, w2, b2, w3, b3


def reference_forward(x, w1, b1, w2, b2, w3, b3):
    h1 = jnp.maximum(x @ w1 + b1, 0.0)
    h2 = jnp.maximum(h1 @ w2 + b2, 0.0)
    return h2 @ w3 + b3


# TODO(synk): torch.from_numpy / Adam optimizer / MSELoss / gamma are host-side
# or training-only state with no forward-pass Pallas equivalent; omitted.

if __name__ == "__main__":
    key = jax.random.PRNGKey(0)
    k_x, k_x2, k_p = jax.random.split(key, 3)

    B, D_in = 16, 32  # small demo shapes; tiny-batch path (single 128-row tile)
    x = jax.random.normal(k_x, (B, D_in), jnp.float32)
    params = init_params(k_p, D_in)
    prepared = prepare_params(*params)

    out = ff_v_estimator_forward(x, prepared)
    out = jax.block_until_ready(out)
    ref = reference_forward(x, *params)
    assert out.shape == (B, 1)
    # bf16 matmul inputs with f32 accumulation -> relaxed tolerance vs pure-f32.
    assert jnp.allclose(out, ref, atol=5e-2, rtol=5e-2), (
        f"mismatch vs reference, max abs err={jnp.max(jnp.abs(out - ref))}")

    # Second check: >=128 rows exercises the no-pad, ragged-last-block path
    # (B=160 -> block_b=128, grid=(2,), second block partially out of bounds).
    B2 = 160
    x2 = jax.random.normal(k_x2, (B2, D_in), jnp.float32)
    out2 = jax.block_until_ready(ff_v_estimator_forward(x2, prepared))
    ref2 = reference_forward(x2, *params)
    assert out2.shape == (B2, 1)
    assert jnp.allclose(out2, ref2, atol=5e-2, rtol=5e-2), (
        f"ragged-path mismatch, max abs err={jnp.max(jnp.abs(out2 - ref2))}")

    print("KERNEL_OK")
</pallas_src>

<mosaic_0001>
module attributes {stable_mosaic.version = 11 : i64} {
  func.func @_mlp_kernel(%arg0: i32, %arg1: memref<128x32xf32, #tpu.memory_space<vmem>>, %arg2: memref<32x128xbf16, #tpu.memory_space<vmem>>, %arg3: memref<128x128xbf16, #tpu.memory_space<vmem>>, %arg4: memref<4x128xf32, #tpu.memory_space<vmem>>, %arg5: memref<1x128xf32, #tpu.memory_space<vmem>>) attributes {dimension_semantics = [#tpu.dimension_semantics<parallel>], iteration_bounds = array<i64: 1>, scalar_prefetch = 0 : i64, scratch_operands = 0 : i64, tpu.core_type = #tpu.core_type<tc>, window_params = [{transform_indices = @transform_0, window_bounds = array<i64: 128, 32>}, {pipeline_mode = #tpu.pipeline_mode<synchronous>, transform_indices = @transform_1, window_bounds = array<i64: 32, 128>}, {pipeline_mode = #tpu.pipeline_mode<synchronous>, transform_indices = @transform_2, window_bounds = array<i64: 128, 128>}, {pipeline_mode = #tpu.pipeline_mode<synchronous>, transform_indices = @transform_3, window_bounds = array<i64: 4, 128>}, {transform_indices = @transform_4, window_bounds = array<i64: 1, 128>}]} {
    %c0 = arith.constant 0 : index
    %c0_0 = arith.constant 0 : index
    %0 = vector.load %arg4[%c0, %c0_0] : memref<4x128xf32, #tpu.memory_space<vmem>>, vector<1x128xf32>
    %c1 = arith.constant 1 : index
    %c0_1 = arith.constant 0 : index
    %1 = vector.load %arg4[%c1, %c0_1] : memref<4x128xf32, #tpu.memory_space<vmem>>, vector<1x128xf32>
    %c2 = arith.constant 2 : index
    %c0_2 = arith.constant 0 : index
    %2 = vector.load %arg4[%c2, %c0_2] : memref<4x128xf32, #tpu.memory_space<vmem>>, vector<1x128xf32>
    %c3 = arith.constant 3 : index
    %c0_3 = arith.constant 0 : index
    %3 = vector.load %arg4[%c3, %c0_3] : memref<4x128xf32, #tpu.memory_space<vmem>>, vector<1x128xf32>
    %c0_4 = arith.constant 0 : index
    %c0_5 = arith.constant 0 : index
    %4 = vector.load %arg1[%c0_4, %c0_5] : memref<128x32xf32, #tpu.memory_space<vmem>>, vector<128x32xf32>
    %5 = arith.truncf %4 : vector<128x32xf32> to vector<128x32xbf16>
    %c0_6 = arith.constant 0 : index
    %c0_7 = arith.constant 0 : index
    %6 = vector.load %arg2[%c0_6, %c0_7] : memref<32x128xbf16, #tpu.memory_space<vmem>>, vector<32x128xbf16>
    %cst = arith.constant dense<0.000000e+00> : vector<128x128xf32>
    %7 = tpu.matmul %5, %6, %cst {dimension_numbers = #tpu.dot_dimension_numbers<[1], [0], [0], [1], [0, 0, 1, 1], [], []>} : vector<128x32xbf16>, vector<32x128xbf16>, vector<128x128xf32> -> vector<128x128xf32>
    %8 = vector.broadcast %0 : vector<1x128xf32> to vector<128x128xf32>
    %9 = arith.addf %7, %8 : vector<128x128xf32>
    %cst_8 = arith.constant 0.000000e+00 : f32
    %10 = vector.broadcast %cst_8 : f32 to vector<128x128xf32>
    %11 = arith.maximumf %9, %10 : vector<128x128xf32>
    %12 = arith.truncf %11 : vector<128x128xf32> to vector<128x128xbf16>
    %c0_9 = arith.constant 0 : index
    %c0_10 = arith.constant 0 : index
    %13 = vector.load %arg3[%c0_9, %c0_10] : memref<128x128xbf16, #tpu.memory_space<vmem>>, vector<128x128xbf16>
    %cst_11 = arith.constant dense<0.000000e+00> : vector<128x128xf32>
    %14 = tpu.matmul %12, %13, %cst_11 {dimension_numbers = #tpu.dot_dimension_numbers<[1], [0], [0], [1], [0, 0, 1, 1], [], []>} : vector<128x128xbf16>, vector<128x128xbf16>, vector<128x128xf32> -> vector<128x128xf32>
    %15 = vector.broadcast %1 : vector<1x128xf32> to vector<128x128xf32>
    %16 = arith.addf %14, %15 : vector<128x128xf32>
    %cst_12 = arith.constant 0.000000e+00 : f32
    %17 = vector.broadcast %cst_12 : f32 to vector<128x128xf32>
    %18 = arith.maximumf %16, %17 : vector<128x128xf32>
    %cst_13 = arith.constant dense<0.000000e+00> : vector<1x128xf32>
    %19 = tpu.matmul %2, %18, %cst_13 {dimension_numbers = #tpu.dot_dimension_numbers<[1], [1], [0], [0], [0, 0, 1, 0], [], []>} : vector<1x128xf32>, vector<128x128xf32>, vector<1x128xf32> -> vector<1x128xf32>
    %20 = arith.addf %19, %3 : vector<1x128xf32>
    %c0_14 = arith.constant 0 : index
    %c0_15 = arith.constant 0 : index
    %21 = vector.load %arg5[%c0_14, %c0_15] : memref<1x128xf32, #tpu.memory_space<vmem>>, vector<1x128xf32>
    tpu.vector_store %arg5[%c0_14, %c0_15], %20 {strides = array<i32>} : memref<1x128xf32, #tpu.memory_space<vmem>>, vector<1x128xf32>,
    return
  }
  func.func @transform_0(%arg0: i32) -> (i32, i32) {
    %c0_i32 = arith.constant 0 : i32
    %c0_i32_0 = arith.constant 0 : i32
    return %arg0, %c0_i32 : i32, i32
  }
  func.func @transform_1(%arg0: i32) -> (i32, i32) {
    %c0_i32 = arith.constant 0 : i32
    %c0_i32_0 = arith.constant 0 : i32
    %c0_i32_1 = arith.constant 0 : i32
    return %c0_i32, %c0_i32_0 : i32, i32
  }
  func.func @transform_2(%arg0: i32) -> (i32, i32) {
    %c0_i32 = arith.constant 0 : i32
    %c0_i32_0 = arith.constant 0 : i32
    %c0_i32_1 = arith.constant 0 : i32
    return %c0_i32, %c0_i32_0 : i32, i32
  }
  func.func @transform_3(%arg0: i32) -> (i32, i32) {
    %c0_i32 = arith.constant 0 : i32
    %c0_i32_0 = arith.constant 0 : i32
    %c0_i32_1 = arith.constant 0 : i32
    return %c0_i32, %c0_i32_0 : i32, i32
  }
  func.func @transform_4(%arg0: i32) -> (i32, i32) {
    %c0_i32 = arith.constant 0 : i32
    %c0_i32_0 = arith.constant 0 : i32
    return %c0_i32, %arg0 : i32, i32
  }
}

</mosaic_0001>

<llo_original>
// kernel: _ff_v_forward_impl.1
$region0: #{_ff_v_forward_impl.1}
  #allocation0 [shape = 'u32[]', space=smem, size = 0x4, offset = 0x4, fixed_abs, tag = 'smem constant byte address 0x4 - core index']
  #allocation1 [shape = 'u32[144,128]{1,0:T(1,128)}', space=vmem, size = 0x12000, scoped, tag = 'internal scratch']
  %s0 = inlined_call_operand.vmem [shape: f32[128,32], index: 0, kind: input, shape index: {}]
  %s1 = inlined_call_operand.vmem [shape: bf16[32,128], index: 1, kind: input, shape index: {}]
  %s2 = inlined_call_operand.vmem [shape: bf16[128,128], index: 2, kind: input, shape index: {}]
  %s3 = inlined_call_operand.vmem [shape: f32[4,128], index: 3, kind: input, shape index: {}]
  %s4 = inlined_call_operand.vmem [shape: f32[1,128], index: 4, kind: output, shape index: {}]
  %s5 = sld [smem:[#allocation0]]
  $region26: #{_ff_v_forward_impl.1} parent=0
    _
  %s7 = ssub.s32 1, %s5
  %s8 = scalar_select 0, %s7, %s5
  // Predicated region
  $region2: #{_ff_v_forward_impl.1} parent=0 // pred_check
    _
  $region3: #{_ff_v_forward_impl.1} parent=0 // pred_check_branch
    %10 = sbr.rel (0) target = $region5
  $region4: #{_ff_v_forward_impl.1} parent=0 // pred_region
    _
  $region5: #{_ff_v_forward_impl.1} parent=0 // pred_fallthru
    _
  // Predicated region
  $region6: #{_ff_v_forward_impl.1} parent=0 // pred_check
    _
  $region7: #{_ff_v_forward_impl.1} parent=0 // pred_check_branch
    %12 = sbr.rel (0) target = $region9
  $region8: #{_ff_v_forward_impl.1} parent=0 // pred_region
    _
  $region9: #{_ff_v_forward_impl.1} parent=0 // pred_fallthru
    _
  // Predicated region
  $region10: #{_ff_v_forward_impl.1} parent=0 // pred_check
    _
  $region11: #{_ff_v_forward_impl.1} parent=0 // pred_check_branch
    %14 = sbr.rel (0) target = $region13
  $region12: #{_ff_v_forward_impl.1} parent=0 // pred_region
    _
  $region13: #{_ff_v_forward_impl.1} parent=0 // pred_fallthru
    _
  // Predicated region
  $region14: #{_ff_v_forward_impl.1} parent=0 // pred_check
    _
  $region15: #{_ff_v_forward_impl.1} parent=0 // pred_check_branch
    %16 = sbr.rel (0) target = $region17
  $region16: #{_ff_v_forward_impl.1} parent=0 // pred_region
    _
  $region17: #{_ff_v_forward_impl.1} parent=0 // pred_fallthru
    _
  %v18 = vld [vmem:[%s3] sm:$0x1]
  %v19 = vld [vmem:[%s3 + $0x1] sm:$0x1]
  %v20 = vld [vmem:[%s3 + $0x2] sm:$0x1]
  %v21 = vld [vmem:[%s3 + $0x3] sm:$0x1]
  %v22 = vld [vmem:[%s0] sm:$0xff]
  %v23 = vld [vmem:[%s0 + $0x8] sm:$0xff]
  %v24 = vld [vmem:[%s0 + $0x10] sm:$0xff]
  %v25 = vld [vmem:[%s0 + $0x18] sm:$0xff]
  %v26 = vld [vmem:[%s0 + $0x20] sm:$0xff]
  %v27 = vld [vmem:[%s0 + $0x28] sm:$0xff]
  %v28 = vld [vmem:[%s0 + $0x30] sm:$0xff]
  %v29 = vld [vmem:[%s0 + $0x38] sm:$0xff]
  %v30 = vld [vmem:[%s0 + $0x40] sm:$0xff]
  %v31 = vld [vmem:[%s0 + $0x48] sm:$0xff]
  %v32 = vld [vmem:[%s0 + $0x50] sm:$0xff]
  %v33 = vld [vmem:[%s0 + $0x58] sm:$0xff]
  %v34 = vld [vmem:[%s0 + $0x60] sm:$0xff]
  %v35 = vld [vmem:[%s0 + $0x68] sm:$0xff]
  %v36 = vld [vmem:[%s0 + $0x70] sm:$0xff]
  %v37 = vld [vmem:[%s0 + $0x78] sm:$0xff]
  %v38 = vpack.c.bf16 %v23, %v22
  %v39 = vpack.c.bf16 %v25, %v24
  %v40 = vpack.c.bf16 %v27, %v26
  %v41 = vpack.c.bf16 %v29, %v28
  %v42 = vpack.c.bf16 %v31, %v30
  %v43 = vpack.c.bf16 %v33, %v32
  %v44 = vpack.c.bf16 %v35, %v34
  %v45 = vpack.c.bf16 %v37, %v36
  %v46 = vld [vmem:[%s1] sm:$0xf]
  %v47 = vld [vmem:[%s1 + $0x4] sm:$0xf]
  %v48 = vld [vmem:[%s1 + $0x8] sm:$0xf]
  %v49 = vld [vmem:[%s1 + $0xc] sm:$0xf]
  %v50 = vlaneseq
  %v51 = vshrl.u32 %v50, 7
  %v52 = vsub.s32 0, %v51
  %v53 = vrot.slane %v18, %v52
  %v58 = vunpack.c.l.b16 %v46
  %v59 = vunpack.c.l.b16 %v47
  %v60 = vunpack.c.l.b16 %v48
  %v61 = vunpack.c.l.b16 %v49
  %v62 = vpack.c.b16 %v59, %v58
  %v63 = vpack.c.b16 %v61, %v60
  %vm66 = vcmask 261120
  %v68 = vsel %vm66, %v38, 0
  %v71 = vsel %vm66, %v39, 0
  %v74 = vsel %vm66, %v40, 0
  %v77 = vsel %vm66, %v41, 0
  %v80 = vsel %vm66, %v42, 0
  %v83 = vsel %vm66, %v43, 0
  %v86 = vsel %vm66, %v44, 0
  %v89 = vsel %vm66, %v45, 0
  %91 = vmatprep.subr.bf16.mxu0 0
  %92 = vmatpush1.bf16.msra.mxu0 %v62
  %93 = vmatprep.subr.bf16.mxu0 0
  %94 = vmatpush1.bf16.msra.mxu0 %v63
  %95 = vmatprep.subr.bf16.mxu0 0
  %96 = vmatpush1.bf16.msra.mxu0 0
  %97 = vmatprep.subr.bf16.mxu0 0
  %98 = vmatpush1.bf16.msra.mxu0 0
  %99 = vmatprep.subr.bf16.mxu0 0
  %100 = vmatpush1.bf16.msra.mxu0 0
  %101 = vmatprep.subr.bf16.mxu0 0
  %102 = vmatpush1.bf16.msra.mxu0 0
  %103 = vmatprep.subr.bf16.mxu0 0
  %104 = vmatpush1.bf16.msra.mxu0 0
  %105 = vmatprep.subr.bf16.mxu0 0
  %106 = vmatpush1.bf16.msra.mxu0 0
  %107 = vmatprep.subr.bf16.mxu0 0
  %108 = vmatpush1.bf16.msra.mxu0 0
  %109 = vmatprep.subr.bf16.mxu0 0
  %110 = vmatpush1.bf16.msra.mxu0 0
  %111 = vmatprep.subr.bf16.mxu0 0
  %112 = vmatpush1.bf16.msra.mxu0 0
  %113 = vmatprep.subr.bf16.mxu0 0
  %114 = vmatpush1.bf16.msra.mxu0 0
  %115 = vmatprep.subr.bf16.mxu0 0
  %116 = vmatpush1.bf16.msra.mxu0 0
  %117 = vmatprep.subr.bf16.mxu0 0
  %118 = vmatpush1.bf16.msra.mxu0 0
  %119 = vmatprep.subr.bf16.mxu0 0
  %120 = vmatpush1.bf16.msra.mxu0 0
  %121 = vmatprep.subr.bf16.mxu0 0
  %122 = vmatpush1.bf16.msra.mxu0 0
  %123 = vmatprep.mubr.bf16.mxu0 0
  %124 = vmatmul.mubr.bf16.gmra.mrb[0].mxu0 %v68
  %v125 = vpop.f32.mrb[0].mxu0
  %v126 = vadd.f32 %v53, %v125
  %v127 = vpop.f32.mrb[0].mxu0
  %v128 = vpop.f32.mrb[0].mxu0
  %v129 = vadd.f32 %v53, %v128
  %v130 = vpop.f32.mrb[0].mxu0
  %131 = vmatprep.mubr.bf16.mxu0 0
  %132 = vmatmul.mubr.bf16.gmra.mrb[0].mxu0 %v71
  %v133 = vpop.f32.mrb[0].mxu0
  %v134 = vadd.f32 %v53, %v133
  %v135 = vpop.f32.mrb[0].mxu0
  %v136 = vpop.f32.mrb[0].mxu0
  %v137 = vadd.f32 %v53, %v136
  %v138 = vpop.f32.mrb[0].mxu0
  %139 = vmatprep.mubr.bf16.mxu0 0
  %140 = vmatmul.mubr.bf16.gmra.mrb[0].mxu0 %v74
  %v141 = vpop.f32.mrb[0].mxu0
  %v142 = vadd.f32 %v53, %v141
  %v143 = vpop.f32.mrb[0].mxu0
  %v144 = vpop.f32.mrb[0].mxu0
  %v145 = vadd.f32 %v53, %v144
  %v146 = vpop.f32.mrb[0].mxu0
  %147 = vmatprep.mubr.bf16.mxu0 0
  %148 = vmatmul.mubr.bf16.gmra.mrb[0].mxu0 %v77
  %v149 = vpop.f32.mrb[0].mxu0
  %v150 = vadd.f32 %v53, %v149
  %v151 = vpop.f32.mrb[0].mxu0
  %v152 = vpop.f32.mrb[0].mxu0
  %v153 = vadd.f32 %v53, %v152
  %v154 = vpop.f32.mrb[0].mxu0
  %155 = vmatprep.mubr.bf16.mxu0 0
  %156 = vmatmul.mubr.bf16.gmra.mrb[0].mxu0 %v80
  %v157 = vpop.f32.mrb[0].mxu0
  %v158 = vadd.f32 %v53, %v157
  %v159 = vpop.f32.mrb[0].mxu0
  %v160 = vpop.f32.mrb[0].mxu0
  %v161 = vadd.f32 %v53, %v160
  %v162 = vpop.f32.mrb[0].mxu0
  %163 = vmatprep.mubr.bf16.mxu0 0
  %164 = vmatmul.mubr.bf16.gmra.mrb[0].mxu0 %v83
  %v165 = vpop.f32.mrb[0].mxu0
  %v166 = vadd.f32 %v53, %v165
  %v167 = vpop.f32.mrb[0].mxu0
  %v168 = vpop.f32.mrb[0].mxu0
  %v169 = vadd.f32 %v53, %v168
  %v170 = vpop.f32.mrb[0].mxu0
  %171 = vmatprep.mubr.bf16.mxu0 0
  %172 = vmatmul.mubr.bf16.gmra.mrb[0].mxu0 %v86
  %v173 = vpop.f32.mrb[0].mxu0
  %v174 = vadd.f32 %v53, %v173
  %v175 = vpop.f32.mrb[0].mxu0
  %v176 = vpop.f32.mrb[0].mxu0
  %v177 = vadd.f32 %v53, %v176
  %v178 = vpop.f32.mrb[0].mxu0
  %179 = vmatprep.mubr.bf16.mxu0 0
  %180 = vmatmul.mubr.bf16.gmra.mrb[0].mxu0 %v89
  %v181 = vpop.f32.mrb[0].mxu0
  %v182 = vadd.f32 %v53, %v181
  %v183 = vpop.f32.mrb[0].mxu0
  %v184 = vpop.f32.mrb[0].mxu0
  %v185 = vadd.f32 %v53, %v184
  %v186 = vpop.f32.mrb[0].mxu0
  %187 = vdwg.mxu0
  %v188 = vmax.f32 %v126, 0.0
  %v189 = vmax.f32 %v129, 0.0
  %v190 = vmax.f32 %v134, 0.0
  %v191 = vmax.f32 %v137, 0.0
  %v192 = vmax.f32 %v142, 0.0
  %v193 = vmax.f32 %v145, 0.0
  %v194 = vmax.f32 %v150, 0.0
  %v195 = vmax.f32 %v153, 0.0
  %v196 = vmax.f32 %v158, 0.0
  %v197 = vmax.f32 %v161, 0.0
  %v198 = vmax.f32 %v166, 0.0
  %v199 = vmax.f32 %v169, 0.0
  %v200 = vmax.f32 %v174, 0.0
  %v201 = vmax.f32 %v177, 0.0
  %v202 = vmax.f32 %v182, 0.0
  %v203 = vmax.f32 %v185, 0.0
  %v204 = vpack.c.bf16 %v189, %v188
  %v205 = vpack.c.bf16 %v191, %v190
  %v206 = vpack.c.bf16 %v193, %v192
  %v207 = vpack.c.bf16 %v195, %v194
  %v208 = vpack.c.bf16 %v197, %v196
  %v209 = vpack.c.bf16 %v199, %v198
  %v210 = vpack.c.bf16 %v201, %v200
  %v211 = vpack.c.bf16 %v203, %v202
  %v212 = vld [vmem:[%s2] sm:$0xf]
  %v213 = vld [vmem:[%s2 + $0x4] sm:$0xf]
  %v214 = vld [vmem:[%s2 + $0x8] sm:$0xf]
  %v215 = vld [vmem:[%s2 + $0xc] sm:$0xf]
  %v216 = vld [vmem:[%s2 + $0x10] sm:$0xf]
  %v217 = vld [vmem:[%s2 + $0x14] sm:$0xf]
  %v218 = vld [vmem:[%s2 + $0x18] sm:$0xf]
  %v219 = vld [vmem:[%s2 + $0x1c] sm:$0xf]
  %v220 = vld [vmem:[%s2 + $0x20] sm:$0xf]
  %v221 = vld [vmem:[%s2 + $0x24] sm:$0xf]
  %v222 = vld [vmem:[%s2 + $0x28] sm:$0xf]
  %v223 = vld [vmem:[%s2 + $0x2c] sm:$0xf]
  %v224 = vld [vmem:[%s2 + $0x30] sm:$0xf]
  %v225 = vld [vmem:[%s2 + $0x34] sm:$0xf]
  %v226 = vld [vmem:[%s2 + $0x38] sm:$0xf]
  %v227 = vld [vmem:[%s2 + $0x3c] sm:$0xf]
  %v228 = vlaneseq
  %v229 = vshrl.u32 %v228, 7
  %v230 = vsub.s32 0, %v229
  %v231 = vrot.slane %v19, %v230
  %v248 = vunpack.c.l.b16 %v212
  %v249 = vunpack.c.l.b16 %v213
  %v250 = vunpack.c.l.b16 %v214
  %v251 = vunpack.c.l.b16 %v215
  %v252 = vunpack.c.l.b16 %v216
  %v253 = vunpack.c.l.b16 %v217
  %v254 = vunpack.c.l.b16 %v218
  %v255 = vunpack.c.l.b16 %v219
  %v256 = vunpack.c.l.b16 %v220
  %v257 = vunpack.c.l.b16 %v221
  %v258 = vunpack.c.l.b16 %v222
  %v259 = vunpack.c.l.b16 %v223
  %v260 = vunpack.c.l.b16 %v224
  %v261 = vunpack.c.l.b16 %v225
  %v262 = vunpack.c.l.b16 %v226
  %v263 = vunpack.c.l.b16 %v227
  %v264 = vpack.c.b16 %v249, %v248
  %v265 = vpack.c.b16 %v251, %v250
  %v266 = vpack.c.b16 %v253, %v252
  %v267 = vpack.c.b16 %v255, %v254
  %v268 = vpack.c.b16 %v257, %v256
  %v269 = vpack.c.b16 %v259, %v258
  %v270 = vpack.c.b16 %v261, %v260
  %v271 = vpack.c.b16 %v263, %v262
  %280 = vmatprep.subr.bf16.mxu0 0
  %281 = vmatpush1.bf16.msra.mxu0 %v264
  %282 = vmatprep.subr.bf16.mxu0 0
  %283 = vmatpush1.bf16.msra.mxu0 %v265
  %284 = vmatprep.subr.bf16.mxu0 0
  %285 = vmatpush1.bf16.msra.mxu0 %v266
  %286 = vmatprep.subr.bf16.mxu0 0
  %287 = vmatpush1.bf16.msra.mxu0 %v267
  %288 = vmatprep.subr.bf16.mxu0 0
  %289 = vmatpush1.bf16.msra.mxu0 %v268
  %290 = vmatprep.subr.bf16.mxu0 0
  %291 = vmatpush1.bf16.msra.mxu0 %v269
  %292 = vmatprep.subr.bf16.mxu0 0
  %293 = vmatpush1.bf16.msra.mxu0 %v270
  %294 = vmatprep.subr.bf16.mxu0 0
  %295 = vmatpush1.bf16.msra.mxu0 %v271
  %296 = vmatprep.subr.bf16.mxu0 0
  %297 = vmatpush1.bf16.msra.mxu0 0
  %298 = vmatprep.subr.bf16.mxu0 0
  %299 = vmatpush1.bf16.msra.mxu0 0
  %300 = vmatprep.subr.bf16.mxu0 0
  %301 = vmatpush1.bf16.msra.mxu0 0
  %302 = vmatprep.subr.bf16.mxu0 0
  %303 = vmatpush1.bf16.msra.mxu0 0
  %304 = vmatprep.subr.bf16.mxu0 0
  %305 = vmatpush1.bf16.msra.mxu0 0
  %306 = vmatprep.subr.bf16.mxu0 0
  %307 = vmatpush1.bf16.msra.mxu0 0
  %308 = vmatprep.subr.bf16.mxu0 0
  %309 = vmatpush1.bf16.msra.mxu0 0
  %310 = vmatprep.subr.bf16.mxu0 0
  %311 = vmatpush1.bf16.msra.mxu0 0
  %312 = vmatprep.mubr.bf16.mxu0 0
  %313 = vmatmul.mubr.bf16.gmra.mrb[0].mxu0 %v204
  %v314 = vpop.f32.mrb[0].mxu0
  %v315 = vadd.f32 %v231, %v314
  %v316 = vpop.f32.mrb[0].mxu0
  %v317 = vpop.f32.mrb[0].mxu0
  %v318 = vadd.f32 %v231, %v317
  %v319 = vpop.f32.mrb[0].mxu0
  %320 = vmatprep.mubr.bf16.mxu0 0
  %321 = vmatmul.mubr.bf16.gmra.mrb[0].mxu0 %v205
  %v322 = vpop.f32.mrb[0].mxu0
  %v323 = vadd.f32 %v231, %v322
  %v324 = vpop.f32.mrb[0].mxu0
  %v325 = vpop.f32.mrb[0].mxu0
  %v326 = vadd.f32 %v231, %v325
  %v327 = vpop.f32.mrb[0].mxu0
  %328 = vmatprep.mubr.bf16.mxu0 0
  %329 = vmatmul.mubr.bf16.gmra.mrb[0].mxu0 %v206
  %v330 = vpop.f32.mrb[0].mxu0
  %v331 = vadd.f32 %v231, %v330
  %v332 = vpop.f32.mrb[0].mxu0
  %v333 = vpop.f32.mrb[0].mxu0
  %v334 = vadd.f32 %v231, %v333
  %v335 = vpop.f32.mrb[0].mxu0
  %336 = vmatprep.mubr.bf16.mxu0 0
  %337 = vmatmul.mubr.bf16.gmra.mrb[0].mxu0 %v207
  %v338 = vpop.f32.mrb[0].mxu0
  %v339 = vadd.f32 %v231, %v338
  %v340 = vpop.f32.mrb[0].mxu0
  %v341 = vpop.f32.mrb[0].mxu0
  %v342 = vadd.f32 %v231, %v341
  %v343 = vpop.f32.mrb[0].mxu0
  %344 = vmatprep.mubr.bf16.mxu0 0
  %345 = vmatmul.mubr.bf16.gmra.mrb[0].mxu0 %v208
  %v346 = vpop.f32.mrb[0].mxu0
  %v347 = vadd.f32 %v231, %v346
  %v348 = vpop.f32.mrb[0].mxu0
  %v349 = vpop.f32.mrb[0].mxu0
  %v350 = vadd.f32 %v231, %v349
  %v351 = vpop.f32.mrb[0].mxu0
  %352 = vmatprep.mubr.bf16.mxu0 0
  %353 = vmatmul.mubr.bf16.gmra.mrb[0].mxu0 %v209
  %v354 = vpop.f32.mrb[0].mxu0
  %v355 = vadd.f32 %v231, %v354
  %v356 = vpop.f32.mrb[0].mxu0
  %v357 = vpop.f32.mrb[0].mxu0
  %v358 = vadd.f32 %v231, %v357
  %v359 = vpop.f32.mrb[0].mxu0
  %360 = vmatprep.mubr.bf16.mxu0 0
  %361 = vmatmul.mubr.bf16.gmra.mrb[0].mxu0 %v210
  %v362 = vpop.f32.mrb[0].mxu0
  %v363 = vadd.f32 %v231, %v362
  %v364 = vpop.f32.mrb[0].mxu0
  %v365 = vpop.f32.mrb[0].mxu0
  %v366 = vadd.f32 %v231, %v365
  %v367 = vpop.f32.mrb[0].mxu0
  %368 = vmatprep.mubr.bf16.mxu0 0
  %369 = vmatmul.mubr.bf16.gmra.mrb[0].mxu0 %v211
  %v370 = vpop.f32.mrb[0].mxu0
  %v371 = vadd.f32 %v231, %v370
  %v372 = vpop.f32.mrb[0].mxu0
  %v373 = vpop.f32.mrb[0].mxu0
  %v374 = vadd.f32 %v231, %v373
  %v375 = vpop.f32.mrb[0].mxu0
  %376 = vdwg.mxu0
  %v377 = vmax.f32 %v315, 0.0
  %v378 = vmax.f32 %v318, 0.0
  %v379 = vmax.f32 %v323, 0.0
  %v380 = vmax.f32 %v326, 0.0
  %v381 = vmax.f32 %v331, 0.0
  %v382 = vmax.f32 %v334, 0.0
  %v383 = vmax.f32 %v339, 0.0
  %v384 = vmax.f32 %v342, 0.0
  %v385 = vmax.f32 %v347, 0.0
  %v386 = vmax.f32 %v350, 0.0
  %v387 = vmax.f32 %v355, 0.0
  %v388 = vmax.f32 %v358, 0.0
  %v389 = vmax.f32 %v363, 0.0
  %v390 = vmax.f32 %v366, 0.0
  %v391 = vmax.f32 %v371, 0.0
  %v392 = vmax.f32 %v374, 0.0
  %393 = vmatprep.subr.mxu0 0.0
  %394 = vmatpush1.xpose.msra.mxu0 %v377
  %395 = vmatprep.subr.mxu0 0.0
  %396 = vmatpush1.xpose.msra.mxu0 %v378
  %397 = vmatprep.subr.mxu0 0.0
  %398 = vmatpush1.xpose.msra.mxu0 %v379
  %399 = vmatprep.subr.mxu0 0.0
  %400 = vmatpush1.xpose.msra.mxu0 %v380
  %401 = vmatprep.subr.mxu0 0.0
  %402 = vmatpush1.xpose.msra.mxu0 %v381
  %403 = vmatprep.subr.mxu0 0.0
  %404 = vmatpush1.xpose.msra.mxu0 %v382
  %405 = vmatprep.subr.mxu0 0.0
  %406 = vmatpush1.xpose.msra.mxu0 %v383
  %407 = vmatprep.subr.mxu0 0.0
  %408 = vmatpush1.xpose.msra.mxu0 %v384
  %409 = vmatprep.subr.mxu0 0.0
  %410 = vmatpush1.xpose.msra.mxu0 %v385
  %411 = vmatprep.subr.mxu0 0.0
  %412 = vmatpush1.xpose.msra.mxu0 %v386
  %413 = vmatprep.subr.mxu0 0.0
  %414 = vmatpush1.xpose.msra.mxu0 %v387
  %415 = vmatprep.subr.mxu0 0.0
  %416 = vmatpush1.xpose.msra.mxu0 %v388
  %417 = vmatprep.subr.mxu0 0.0
  %418 = vmatpush1.xpose.msra.mxu0 %v389
  %419 = vmatprep.subr.mxu0 0.0
  %420 = vmatpush1.xpose.msra.mxu0 %v390
  %421 = vmatprep.subr.mxu0 0.0
  %422 = vmatpush1.xpose.msra.mxu0 %v391
  %423 = vmatprep.subr.mxu0 0.0
  %424 = vmatpush1.xpose.msra.mxu0 %v392
  %425 = vmatprep.subr.mxu0 0.0
  %426 = vmatpush1.xpose.msra.mxu0 0.0
  %427 = vmatprep.subr.mxu0 0.0
  %428 = vmatpush1.xpose.msra.mxu0 0.0
  %429 = vmatprep.subr.mxu0 0.0
  %430 = vmatpush1.xpose.msra.mxu0 0.0
  %431 = vmatprep.subr.mxu0 0.0
  %432 = vmatpush1.xpose.msra.mxu0 0.0
  %433 = vmatprep.subr.mxu0 0.0
  %434 = vmatpush1.xpose.msra.mxu0 0.0
  %435 = vmatprep.subr.mxu0 0.0
  %436 = vmatpush1.xpose.msra.mxu0 0.0
  %437 = vmatprep.subr.mxu0 0.0
  %438 = vmatpush1.xpose.msra.mxu0 0.0
  %439 = vmatprep.subr.mxu0 0.0
  %440 = vmatpush1.xpose.msra.mxu0 0.0
  %441 = vmatprep.subr.mxu0 0.0
  %442 = vmatpush1.xpose.msra.mxu0 0.0
  %443 = vmatprep.subr.mxu0 0.0
  %444 = vmatpush1.xpose.msra.mxu0 0.0
  %445 = vmatprep.subr.mxu0 0.0
  %446 = vmatpush1.xpose.msra.mxu0 0.0
  %447 = vmatprep.subr.mxu0 0.0
  %448 = vmatpush1.xpose.msra.mxu0 0.0
  %449 = vmatprep.subr.mxu0 0.0
  %450 = vmatpush1.xpose.msra.mxu0 0.0
  %451 = vmatprep.subr.mxu0 0.0
  %452 = vmatpush1.xpose.msra.mxu0 0.0
  %453 = vmatprep.subr.mxu0 0.0
  %454 = vmatpush1.xpose.msra.mxu0 0.0
  %455 = vmatprep.subr.mxu0 0.0
  %456 = vmatpush1.xpose.msra.mxu0 0.0
  %457 = vmatprep.mubr.f32.mxu0 0.0
  %458 = vmatmul.mubr.f32.gmra.mrb[0].mxu0 %v20
  %v459 = vpop.f32.mrb[0].mxu0
  %v460 = vadd.f32 %v21, %v459
  %v461 = vpop.f32.mrb[0].mxu0
  %462 = vdwg.mxu0
  %463 = vst [vmem:[%s4] sm:$0x1] %v460
  // Predicated region
  $region18: #{_ff_v_forward_impl.1} parent=0 // pred_check
    _
  $region19: #{_ff_v_forward_impl.1} parent=0 // pred_check_branch
    %465 = sbr.rel (0) target = $region21
  $region20: #{_ff_v_forward_impl.1} parent=0 // pred_region
    _
  $region21: #{_ff_v_forward_impl.1} parent=0 // pred_fallthru
    _
  // Predicated region
  $region22: #{_ff_v_forward_impl.1} parent=0 // pred_check
    _
  $region23: #{_ff_v_forward_impl.1} parent=0 // pred_check_branch
    %467 = sbr.rel (0) target = $region25
  $region24: #{_ff_v_forward_impl.1} parent=0 // pred_region
    _
  $region25: #{_ff_v_forward_impl.1} parent=0 // pred_fallthru
    _

</llo_original>
